<compile_context>
chip_gen: v6e
topology: v6e:2x2x1
jax: 0.10.0
libtpu: 0.0.40
codegen_flags: <defaults>
</compile_context>

<pallas_src>
import jax
import jax.numpy as jnp
from jax import lax
from jax.experimental import pallas as pl
from jax.experimental.pallas import tpu as pltpu


def attention_kernel(x_ref, w1_ref, b1_ref, w2_ref, b2_ref, we_ref, be_ref, o_ref):
    """One batch row.

    x_ref : (1, Tp)    zero-padded input row, Tp = time + 2*3
    w1_ref: (Tr, Tp)   conv_du[0] center-tap weight, zero-padded columns
    b1_ref: (Tr, 1)
    w2_ref: (Tr, Tp)   conv_du[2] center-tap weight, transposed + zero-padded
    b2_ref: (1, Tp)    conv_du[2] bias, zero-padded
    we_ref: (O, K)     expansion conv weight (K = 7)
    be_ref: (O, 1)     expansion conv bias
    o_ref : (O, T)     output block for this batch row
    """
    xp = x_ref[...].astype(jnp.float32)                                    # (1, Tp)

    # conv_du on a length-1 sequence == two dense layers + sigmoids (VPU/XLU,
    # no MXU).  Zero-padded weight columns kill any border-lane contribution.
    h = jax.nn.sigmoid(
        jnp.sum(w1_ref[...] * xp, axis=1, keepdims=True) + b1_ref[...])    # (Tr, 1)
    z = jax.nn.sigmoid(
        jnp.sum(w2_ref[...] * h, axis=0, keepdims=True) + b2_ref[...])     # (1, Tp)

    # Gate.  Border lanes of xp are zero, so s is exactly the zero-padded
    # version of (x * z) that the expansion conv expects.
    s = xp * z                                                             # (1, Tp)

    # expansion = Conv1d(1, O, 7, padding=3): 7 shifted outer products,
    # accumulated in vregs (unrolled at trace time).
    n_taps = we_ref.shape[-1]
    t_out = o_ref.shape[-1]
    wev = we_ref[...]                                                      # (O, K)
    acc = wev[:, 0:1] * s[:, 0:t_out]                                      # (O, T)
    for k in range(1, n_taps):
        acc = acc + wev[:, k:k + 1] * s[:, k:k + t_out]
    o_ref[...] = (acc + be_ref[...]).astype(o_ref.dtype)


def attention_forward(x, w1_full, b1, w2_full, b2, we_full, be):
    """Pallas implementation of Attention.forward.

    x      : (N, 1, T)      w1_full: (T//4, T, 7)   b1: (T//4,)
    w2_full: (T, T//4, 3)   b2: (T,)
    we_full: (O, 1, 7)      be: (O,)
    returns: (N, O, T)
    """
    n, c_in, t = x.shape
    assert c_in == 1, "Attention only admits (N, 1, time) inputs"
    tr = w1_full.shape[0]
    o_ch = we_full.shape[0]
    k_exp = we_full.shape[-1]
    pad = (k_exp - 1) // 2                                   # 3
    tp = t + 2 * pad

    # conv_du runs on length-1 sequences -> only the center tap contributes.
    w1c = w1_full[:, :, w1_full.shape[-1] // 2]              # (Tr, T)
    w2c = w2_full[:, :, w2_full.shape[-1] // 2]              # (T, Tr)

    # Pre-orient + zero-pad on the host so the kernel never transposes/reshapes.
    w1p = jnp.pad(w1c, ((0, 0), (pad, pad)))                 # (Tr, Tp)
    w2tp = jnp.pad(w2c.T, ((0, 0), (pad, pad)))              # (Tr, Tp)
    b1c = b1.reshape(tr, 1)                                  # (Tr, 1)
    b2p = jnp.pad(b2, (pad, pad)).reshape(1, tp)             # (1, Tp)
    wev = we_full[:, 0, :]                                   # (O, K)
    bec = be.reshape(o_ch, 1)                                # (O, 1)
    xpad = jnp.pad(x, ((0, 0), (0, 0), (pad, pad)))          # (N, 1, Tp)

    bytes_io = 4 * (xpad.size + n * o_ch * t
                    + w1p.size + w2tp.size + b1c.size + b2p.size
                    + wev.size + bec.size)
    cost = pl.CostEstimate(
        flops=int(n * (4 * tr * tp + 2 * o_ch * t * k_exp)),
        transcendentals=int(n * (tr + tp)),
        bytes_accessed=int(bytes_io),
    )

    # NOTE: for large N, fold a batch tile into the block (B_TILE, O, T) to
    # amortize per-step pipeline overhead; N=2 here so one row per step keeps
    # both v7x TensorCores busy.
    return pl.pallas_call(
        attention_kernel,
        out_shape=jax.ShapeDtypeStruct((n, o_ch, t), x.dtype),
        grid_spec=pl.GridSpec(
            grid=(n,),
            in_specs=[
                pl.BlockSpec((pl.Squeezed(), 1, tp), lambda i: (i, 0, 0)),
                pl.BlockSpec((tr, tp), lambda i: (0, 0)),
                pl.BlockSpec((tr, 1), lambda i: (0, 0)),
                pl.BlockSpec((tr, tp), lambda i: (0, 0)),
                pl.BlockSpec((1, tp), lambda i: (0, 0)),
                pl.BlockSpec((o_ch, k_exp), lambda i: (0, 0)),
                pl.BlockSpec((o_ch, 1), lambda i: (0, 0)),
            ],
            out_specs=pl.BlockSpec((pl.Squeezed(), o_ch, t), lambda i: (i, 0, 0)),
        ),
        compiler_params=pltpu.CompilerParams(dimension_semantics=("parallel",)),
        cost_estimate=cost,
    )(xpad, w1p, b1c, w2tp, b2p, wev, bec)


def apply_weight_norm(v, g):
    # PyTorch weight_norm (dim=0): w = g * v / ||v||, norm over all dims but 0.
    norm = jnp.sqrt(jnp.sum(v * v, axis=tuple(range(1, v.ndim)), keepdims=True))
    return g * v / norm


def _conv1d(x, w, b, padding):
    # PyTorch Conv1d semantics (cross-correlation), NCL layout.
    y = lax.conv_general_dilated(
        x, w, window_strides=(1,), padding=[(padding, padding)],
        dimension_numbers=("NCH", "OIH", "NCH"),
        precision=lax.Precision.HIGHEST)
    return y + b[None, :, None]


def reference(x, w1_full, b1, w2_full, b2, we_full, be):
    # Pure-JAX replica of Attention.forward.
    xt = jnp.transpose(x, (0, 2, 1))                          # (N, T, 1)
    h = jax.nn.sigmoid(_conv1d(xt, w1_full, b1, padding=3))   # (N, T//4, 1)
    z = jax.nn.sigmoid(_conv1d(h, w2_full, b2, padding=1))    # (N, T, 1)
    y = jnp.transpose(xt * z, (0, 2, 1))                      # (N, 1, T)
    return _conv1d(y, we_full, be, padding=3)                 # (N, O, T)


if __name__ == "__main__":
    time_dim = 96          # `time` arg of the module
    out_channel = 128
    batch = 2
    tr = time_dim // 4

    key = jax.random.PRNGKey(0)
    ks = jax.random.split(key, 9)

    x = jax.random.normal(ks[0], (batch, 1, time_dim), dtype=jnp.float32)

    # conv_du[0]: weight_norm(Conv1d(time, time//4, 7, padding=3))
    v1 = jax.random.normal(ks[1], (tr, time_dim, 7), dtype=jnp.float32) * 0.05
    g1 = jax.random.normal(ks[2], (tr, 1, 1), dtype=jnp.float32) * 0.2 + 1.0
    b1 = jax.random.normal(ks[3], (tr,), dtype=jnp.float32) * 0.1
    w1_full = apply_weight_norm(v1, g1)                       # (Tr, T, 7)

    # conv_du[2]: weight_norm(Conv1d(time//4, time, 3, padding=1))
    v2 = jax.random.normal(ks[4], (time_dim, tr, 3), dtype=jnp.float32) * 0.05
    g2 = jax.random.normal(ks[5], (time_dim, 1, 1), dtype=jnp.float32) * 0.2 + 1.0
    b2 = jax.random.normal(ks[6], (time_dim,), dtype=jnp.float32) * 0.1
    w2_full = apply_weight_norm(v2, g2)                       # (T, Tr, 3)

    # expansion: Conv1d(1, out_channel, 7, padding=3)  (no weight norm)
    we_full = jax.random.normal(ks[7], (out_channel, 1, 7), dtype=jnp.float32) * 0.1
    be = jax.random.normal(ks[8], (out_channel,), dtype=jnp.float32) * 0.1

    out = attention_forward(x, w1_full, b1, w2_full, b2, we_full, be)
    out = jax.block_until_ready(out)

    ref = reference(x, w1_full, b1, w2_full, b2, we_full, be)
    assert out.shape == (batch, out_channel, time_dim)
    assert jnp.allclose(out, ref, atol=1e-4, rtol=1e-4), float(jnp.max(jnp.abs(out - ref)))

    print("KERNEL_OK")
</pallas_src>

<mosaic_0001>
module attributes {stable_mosaic.version = 11 : i64} {
  func.func @attention_kernel(%arg0: i32, %arg1: memref<1x1x102xf32, #tpu.memory_space<vmem>>, %arg2: memref<24x102xf32, #tpu.memory_space<vmem>>, %arg3: memref<24x1xf32, #tpu.memory_space<vmem>>, %arg4: memref<24x102xf32, #tpu.memory_space<vmem>>, %arg5: memref<1x102xf32, #tpu.memory_space<vmem>>, %arg6: memref<128x7xf32, #tpu.memory_space<vmem>>, %arg7: memref<128x1xf32, #tpu.memory_space<vmem>>, %arg8: memref<1x128x96xf32, #tpu.memory_space<vmem>>) attributes {dimension_semantics = [#tpu.dimension_semantics<parallel>], iteration_bounds = array<i64: 2>, scalar_prefetch = 0 : i64, scratch_operands = 0 : i64, tpu.core_type = #tpu.core_type<tc>, window_params = [{transform_indices = @transform_0, window_bounds = array<i64: 1, 1, 102>}, {pipeline_mode = #tpu.pipeline_mode<synchronous>, transform_indices = @transform_1, window_bounds = array<i64: 24, 102>}, {pipeline_mode = #tpu.pipeline_mode<synchronous>, transform_indices = @transform_2, window_bounds = array<i64: 24, 1>}, {pipeline_mode = #tpu.pipeline_mode<synchronous>, transform_indices = @transform_3, window_bounds = array<i64: 24, 102>}, {pipeline_mode = #tpu.pipeline_mode<synchronous>, transform_indices = @transform_4, window_bounds = array<i64: 1, 102>}, {pipeline_mode = #tpu.pipeline_mode<synchronous>, transform_indices = @transform_5, window_bounds = array<i64: 128, 7>}, {pipeline_mode = #tpu.pipeline_mode<synchronous>, transform_indices = @transform_6, window_bounds = array<i64: 128, 1>}, {transform_indices = @transform_7, window_bounds = array<i64: 1, 128, 96>}]} {
    %c0 = arith.constant 0 : index
    %c0_0 = arith.constant 0 : index
    %c0_1 = arith.constant 0 : index
    %0 = vector.load %arg1[%c0, %c0_0, %c0_1] : memref<1x1x102xf32, #tpu.memory_space<vmem>>, vector<1x1x102xf32>
    %1 = vector.shape_cast %0 : vector<1x1x102xf32> to vector<1x102xf32>
    %c0_2 = arith.constant 0 : index
    %c0_3 = arith.constant 0 : index
    %2 = vector.load %arg2[%c0_2, %c0_3] : memref<24x102xf32, #tpu.memory_space<vmem>>, vector<24x102xf32>
    %3 = vector.broadcast %1 : vector<1x102xf32> to vector<24x102xf32>
    %4 = arith.mulf %2, %3 : vector<24x102xf32>
    %cst = arith.constant dense<0.000000e+00> : vector<24xf32>
    %5 = vector.multi_reduction <add>, %4, %cst [1] : vector<24x102xf32> to vector<24xf32>
    %6 = vector.shape_cast %5 : vector<24xf32> to vector<24x1xf32>
    %c0_4 = arith.constant 0 : index
    %c0_5 = arith.constant 0 : index
    %7 = vector.load %arg3[%c0_4, %c0_5] : memref<24x1xf32, #tpu.memory_space<vmem>>, vector<24x1xf32>
    %8 = arith.addf %6, %7 : vector<24x1xf32>
    %9 = arith.negf %8 : vector<24x1xf32>
    %10 = math.exp %9 : vector<24x1xf32>
    %cst_6 = arith.constant 1.000000e+00 : f32
    %11 = vector.broadcast %cst_6 : f32 to vector<24x1xf32>
    %12 = arith.addf %11, %10 : vector<24x1xf32>
    %13 = arith.divf %11, %12 : vector<24x1xf32>
    %c0_7 = arith.constant 0 : index
    %c0_8 = arith.constant 0 : index
    %14 = vector.load %arg4[%c0_7, %c0_8] : memref<24x102xf32, #tpu.memory_space<vmem>>, vector<24x102xf32>
    %15 = vector.broadcast %13 : vector<24x1xf32> to vector<24x102xf32>
    %16 = arith.mulf %14, %15 : vector<24x102xf32>
    %cst_9 = arith.constant dense<0.000000e+00> : vector<102xf32>
    %17 = vector.multi_reduction <add>, %16, %cst_9 [0] : vector<24x102xf32> to vector<102xf32>
    %18 = vector.shape_cast %17 : vector<102xf32> to vector<1x102xf32>
    %c0_10 = arith.constant 0 : index
    %c0_11 = arith.constant 0 : index
    %19 = vector.load %arg5[%c0_10, %c0_11] : memref<1x102xf32, #tpu.memory_space<vmem>>, vector<1x102xf32>
    %20 = arith.addf %18, %19 : vector<1x102xf32>
    %21 = arith.negf %20 : vector<1x102xf32>
    %22 = math.exp %21 : vector<1x102xf32>
    %cst_12 = arith.constant 1.000000e+00 : f32
    %23 = vector.broadcast %cst_12 : f32 to vector<1x102xf32>
    %24 = arith.addf %23, %22 : vector<1x102xf32>
    %25 = arith.divf %23, %24 : vector<1x102xf32>
    %26 = arith.mulf %1, %25 : vector<1x102xf32>
    %c0_13 = arith.constant 0 : index
    %c0_14 = arith.constant 0 : index
    %27 = vector.load %arg6[%c0_13, %c0_14] : memref<128x7xf32, #tpu.memory_space<vmem>>, vector<128x7xf32>
    %28 = vector.extract_strided_slice %27 {offsets = [0, 0], sizes = [128, 1], strides = [1, 1]} : vector<128x7xf32> to vector<128x1xf32>
    %29 = vector.extract_strided_slice %26 {offsets = [0, 0], sizes = [1, 96], strides = [1, 1]} : vector<1x102xf32> to vector<1x96xf32>
    %30 = vector.broadcast %28 : vector<128x1xf32> to vector<128x96xf32>
    %31 = vector.broadcast %29 : vector<1x96xf32> to vector<128x96xf32>
    %32 = arith.mulf %30, %31 : vector<128x96xf32>
    %33 = vector.extract_strided_slice %27 {offsets = [0, 1], sizes = [128, 1], strides = [1, 1]} : vector<128x7xf32> to vector<128x1xf32>
    %34 = vector.extract_strided_slice %26 {offsets = [0, 1], sizes = [1, 96], strides = [1, 1]} : vector<1x102xf32> to vector<1x96xf32>
    %35 = vector.broadcast %33 : vector<128x1xf32> to vector<128x96xf32>
    %36 = vector.broadcast %34 : vector<1x96xf32> to vector<128x96xf32>
    %37 = arith.mulf %35, %36 : vector<128x96xf32>
    %38 = arith.addf %32, %37 : vector<128x96xf32>
    %39 = vector.extract_strided_slice %27 {offsets = [0, 2], sizes = [128, 1], strides = [1, 1]} : vector<128x7xf32> to vector<128x1xf32>
    %40 = vector.extract_strided_slice %26 {offsets = [0, 2], sizes = [1, 96], strides = [1, 1]} : vector<1x102xf32> to vector<1x96xf32>
    %41 = vector.broadcast %39 : vector<128x1xf32> to vector<128x96xf32>
    %42 = vector.broadcast %40 : vector<1x96xf32> to vector<128x96xf32>
    %43 = arith.mulf %41, %42 : vector<128x96xf32>
    %44 = arith.addf %38, %43 : vector<128x96xf32>
    %45 = vector.extract_strided_slice %27 {offsets = [0, 3], sizes = [128, 1], strides = [1, 1]} : vector<128x7xf32> to vector<128x1xf32>
    %46 = vector.extract_strided_slice %26 {offsets = [0, 3], sizes = [1, 96], strides = [1, 1]} : vector<1x102xf32> to vector<1x96xf32>
    %47 = vector.broadcast %45 : vector<128x1xf32> to vector<128x96xf32>
    %48 = vector.broadcast %46 : vector<1x96xf32> to vector<128x96xf32>
    %49 = arith.mulf %47, %48 : vector<128x96xf32>
    %50 = arith.addf %44, %49 : vector<128x96xf32>
    %51 = vector.extract_strided_slice %27 {offsets = [0, 4], sizes = [128, 1], strides = [1, 1]} : vector<128x7xf32> to vector<128x1xf32>
    %52 = vector.extract_strided_slice %26 {offsets = [0, 4], sizes = [1, 96], strides = [1, 1]} : vector<1x102xf32> to vector<1x96xf32>
    %53 = vector.broadcast %51 : vector<128x1xf32> to vector<128x96xf32>
    %54 = vector.broadcast %52 : vector<1x96xf32> to vector<128x96xf32>
    %55 = arith.mulf %53, %54 : vector<128x96xf32>
    %56 = arith.addf %50, %55 : vector<128x96xf32>
    %57 = vector.extract_strided_slice %27 {offsets = [0, 5], sizes = [128, 1], strides = [1, 1]} : vector<128x7xf32> to vector<128x1xf32>
    %58 = vector.extract_strided_slice %26 {offsets = [0, 5], sizes = [1, 96], strides = [1, 1]} : vector<1x102xf32> to vector<1x96xf32>
    %59 = vector.broadcast %57 : vector<128x1xf32> to vector<128x96xf32>
    %60 = vector.broadcast %58 : vector<1x96xf32> to vector<128x96xf32>
    %61 = arith.mulf %59, %60 : vector<128x96xf32>
    %62 = arith.addf %56, %61 : vector<128x96xf32>
    %63 = vector.extract_strided_slice %27 {offsets = [0, 6], sizes = [128, 1], strides = [1, 1]} : vector<128x7xf32> to vector<128x1xf32>
    %64 = vector.extract_strided_slice %26 {offsets = [0, 6], sizes = [1, 96], strides = [1, 1]} : vector<1x102xf32> to vector<1x96xf32>
    %65 = vector.broadcast %63 : vector<128x1xf32> to vector<128x96xf32>
    %66 = vector.broadcast %64 : vector<1x96xf32> to vector<128x96xf32>
    %67 = arith.mulf %65, %66 : vector<128x96xf32>
    %68 = arith.addf %62, %67 : vector<128x96xf32>
    %c0_15 = arith.constant 0 : index
    %c0_16 = arith.constant 0 : index
    %69 = vector.load %arg7[%c0_15, %c0_16] : memref<128x1xf32, #tpu.memory_space<vmem>>, vector<128x1xf32>
    %70 = vector.broadcast %69 : vector<128x1xf32> to vector<128x96xf32>
    %71 = arith.addf %68, %70 : vector<128x96xf32>
    %c0_17 = arith.constant 0 : index
    %c0_18 = arith.constant 0 : index
    %c0_19 = arith.constant 0 : index
    %72 = vector.load %arg8[%c0_17, %c0_18, %c0_19] : memref<1x128x96xf32, #tpu.memory_space<vmem>>, vector<1x128x96xf32>
    %73 = vector.shape_cast %72 : vector<1x128x96xf32> to vector<128x96xf32>
    %74 = vector.shape_cast %71 : vector<128x96xf32> to vector<1x128x96xf32>
    tpu.vector_store %arg8[%c0_17, %c0_18, %c0_19], %74 {strides = array<i32>} : memref<1x128x96xf32, #tpu.memory_space<vmem>>, vector<1x128x96xf32>,
    return
  }
  func.func @transform_0(%arg0: i32) -> (i32, i32, i32) {
    %c0_i32 = arith.constant 0 : i32
    %c0_i32_0 = arith.constant 0 : i32
    %c0_i32_1 = arith.constant 0 : i32
    return %arg0, %c0_i32, %c0_i32_0 : i32, i32, i32
  }
  func.func @transform_1(%arg0: i32) -> (i32, i32) {
    %c0_i32 = arith.constant 0 : i32
    %c0_i32_0 = arith.constant 0 : i32
    %c0_i32_1 = arith.constant 0 : i32
    return %c0_i32, %c0_i32_0 : i32, i32
  }
  func.func @transform_2(%arg0: i32) -> (i32, i32) {
    %c0_i32 = arith.constant 0 : i32
    %c0_i32_0 = arith.constant 0 : i32
    %c0_i32_1 = arith.constant 0 : i32
    return %c0_i32, %c0_i32_0 : i32, i32
  }
  func.func @transform_3(%arg0: i32) -> (i32, i32) {
    %c0_i32 = arith.constant 0 : i32
    %c0_i32_0 = arith.constant 0 : i32
    %c0_i32_1 = arith.constant 0 : i32
    return %c0_i32, %c0_i32_0 : i32, i32
  }
  func.func @transform_4(%arg0: i32) -> (i32, i32) {
    %c0_i32 = arith.constant 0 : i32
    %c0_i32_0 = arith.constant 0 : i32
    %c0_i32_1 = arith.constant 0 : i32
    return %c0_i32, %c0_i32_0 : i32, i32
  }
  func.func @transform_5(%arg0: i32) -> (i32, i32) {
    %c0_i32 = arith.constant 0 : i32
    %c0_i32_0 = arith.constant 0 : i32
    %c0_i32_1 = arith.constant 0 : i32
    return %c0_i32, %c0_i32_0 : i32, i32
  }
  func.func @transform_6(%arg0: i32) -> (i32, i32) {
    %c0_i32 = arith.constant 0 : i32
    %c0_i32_0 = arith.constant 0 : i32
    %c0_i32_1 = arith.constant 0 : i32
    return %c0_i32, %c0_i32_0 : i32, i32
  }
  func.func @transform_7(%arg0: i32) -> (i32, i32, i32) {
    %c0_i32 = arith.constant 0 : i32
    %c0_i32_0 = arith.constant 0 : i32
    %c0_i32_1 = arith.constant 0 : i32
    return %arg0, %c0_i32, %c0_i32_0 : i32, i32, i32
  }
}

</mosaic_0001>

<llo_original>
// kernel: tpu_custom_call.1
$region0: #{tpu_custom_call.1}
  #allocation0 [shape = 'u32[]', space=smem, size = 0x4, offset = 0x4, fixed_abs, tag = 'smem constant byte address 0x4 - core index']
  #allocation1 [shape = 'u32[144,128]{1,0:T(1,128)}', space=vmem, size = 0x12000, scoped, tag = 'internal scratch']
  %s0 = inlined_call_operand.vmem [shape: f32[2,1,102], index: 0, kind: input, shape index: {}]
  %s1 = inlined_call_operand.vmem [shape: f32[24,102], index: 1, kind: input, shape index: {}]
  %s2 = inlined_call_operand.vmem [shape: f32[24,1], index: 2, kind: input, shape index: {}]
  %s3 = inlined_call_operand.vmem [shape: f32[24,102], index: 3, kind: input, shape index: {}]
  %s4 = inlined_call_operand.vmem [shape: f32[1,102], index: 4, kind: input, shape index: {}]
  %s5 = inlined_call_operand.vmem [shape: f32[128,7], index: 5, kind: input, shape index: {}]
  %s6 = inlined_call_operand.vmem [shape: f32[128,1], index: 6, kind: input, shape index: {}]
  %s7 = inlined_call_operand.vmem [shape: f32[2,128,96], index: 7, kind: output, shape index: {}]
  %s8 = sld [smem:[#allocation0]]
  $region61: #{tpu_custom_call.1} parent=0
    _
  %s10 = ssub.s32 1, %s8
  %s11 = scalar_select 0, %s10, %s8
  loop: start=0, step=1, limit=4
  $region2: #{tpu_custom_call.1} parent=0 // loop_pre_header
    _
  $region3: #{tpu_custom_call.1} parent=0 // loop_header
    %s13 = sphi 0, %s17
    %p14 = scmp.ge.s32.totalorder %s13, 4
    %s23 = sphi 0, %s25
    %s26 = sphi 0, %s23
    %s27 = sphi 0, %s26
    %s43 = sphi 0, %s27
    %s47 = sphi 0, %s47
    %s49 = sphi 0, %s47
    %s50 = sphi 0, %s49
    %s64 = sphi 0, %s50
    %s68 = sphi 0, %s68
    %s70 = sphi 0, %s68
    %s71 = sphi 0, %s70
    %s85 = sphi 0, %s71
    %s89 = sphi 0, %s89
    %s91 = sphi 0, %s89
    %s92 = sphi 0, %s91
    %s106 = sphi 0, %s92
    %s110 = sphi 0, %s110
    %s112 = sphi 0, %s110
    %s113 = sphi 0, %s112
    %s127 = sphi 0, %s113
    %s131 = sphi 0, %s131
    %s133 = sphi 0, %s131
    %s134 = sphi 0, %s133
    %s148 = sphi 0, %s134
    %s152 = sphi 0, %s152
    %s154 = sphi 0, %s152
    %s155 = sphi 0, %s154
    %s169 = sphi 0, %s155
    %s175 = sphi 0, %s177
    %s178 = sphi 0, %s175
    %s179 = sphi 0, %s178
    %s195 = sphi 0, %s179
  $region4: #{tpu_custom_call.1} parent=0 // loop_header_branch
    %16 = sbr.rel (%p14) target = $region8
  $region5: #{tpu_custom_call.1} parent=0 // loop_body
    %s18 = ssub.s32 %s13, 1
    %s19 = ssub.s32 %s13, 2
    %s20 = sadd.s32 %s13, 1
    %s21 = ssub.s32 %s13, %s20
    %p22 = scmp.eq.s32.totalorder %s21, 0
    %s24 = sadd.s32 %s23, 1
    %s25 = scalar_select %p22, %s23, %s24
    %p28 = pneg %p22
    %p29 = scmp.eq.s32.totalorder %s13, 1
    %p30 = por %p28, %p29
    %p31 = scmp.ne.s32.totalorder %s23, %s26
    %p32 = scmp.eq.s32.totalorder %s13, 0
    %p33 = por %p31, %p32
    %p34 = scmp.ne.s32.totalorder %s23, %s26
    %p35 = scmp.eq.s32.totalorder %s18, 1
    %p36 = por %p34, %p35
    %p37 = scmp.ne.s32.totalorder %s26, %s27
    %p38 = scmp.eq.s32.totalorder %s18, 0
    %p39 = por %p37, %p38
    %p40 = scmp.ne.s32.totalorder %s26, %s27
    %p41 = scmp.eq.s32.totalorder %s19, 1
    %p42 = por %p40, %p41
    %p44 = scmp.ne.s32.totalorder %s27, %s43
    %p45 = scmp.eq.s32.totalorder %s19, 0
    %p46 = por %p44, %p45
    %s48 = sadd.s32 %s47, 1
    %p51 = scmp.eq.s32.totalorder %s13, 1
    %p52 = scmp.ne.s32.totalorder %s47, %s49
    %p53 = scmp.eq.s32.totalorder %s13, 0
    %p54 = por %p52, %p53
    %p55 = scmp.ne.s32.totalorder %s47, %s49
    %p56 = scmp.eq.s32.totalorder %s18, 1
    %p57 = por %p55, %p56
    %p58 = scmp.ne.s32.totalorder %s49, %s50
    %p59 = scmp.eq.s32.totalorder %s18, 0
    %p60 = por %p58, %p59
    %p61 = scmp.ne.s32.totalorder %s49, %s50
    %p62 = scmp.eq.s32.totalorder %s19, 1
    %p63 = por %p61, %p62
    %p65 = scmp.ne.s32.totalorder %s50, %s64
    %p66 = scmp.eq.s32.totalorder %s19, 0
    %p67 = por %p65, %p66
    %s69 = sadd.s32 %s68, 1
    %p72 = scmp.eq.s32.totalorder %s13, 1
    %p73 = scmp.ne.s32.totalorder %s68, %s70
    %p74 = scmp.eq.s32.totalorder %s13, 0
    %p75 = por %p73, %p74
    %p76 = scmp.ne.s32.totalorder %s68, %s70
    %p77 = scmp.eq.s32.totalorder %s18, 1
    %p78 = por %p76, %p77
    %p79 = scmp.ne.s32.totalorder %s70, %s71
    %p80 = scmp.eq.s32.totalorder %s18, 0
    %p81 = por %p79, %p80
    %p82 = scmp.ne.s32.totalorder %s70, %s71
    %p83 = scmp.eq.s32.totalorder %s19, 1
    %p84 = por %p82, %p83
    %p86 = scmp.ne.s32.totalorder %s71, %s85
    %p87 = scmp.eq.s32.totalorder %s19, 0
    %p88 = por %p86, %p87
    %s90 = sadd.s32 %s89, 1
    %p93 = scmp.eq.s32.totalorder %s13, 1
    %p94 = scmp.ne.s32.totalorder %s89, %s91
    %p95 = scmp.eq.s32.totalorder %s13, 0
    %p96 = por %p94, %p95
    %p97 = scmp.ne.s32.totalorder %s89, %s91
    %p98 = scmp.eq.s32.totalorder %s18, 1
    %p99 = por %p97, %p98
    %p100 = scmp.ne.s32.totalorder %s91, %s92
    %p101 = scmp.eq.s32.totalorder %s18, 0
    %p102 = por %p100, %p101
    %p103 = scmp.ne.s32.totalorder %s91, %s92
    %p104 = scmp.eq.s32.totalorder %s19, 1
    %p105 = por %p103, %p104
    %p107 = scmp.ne.s32.totalorder %s92, %s106
    %p108 = scmp.eq.s32.totalorder %s19, 0
    %p109 = por %p107, %p108
    %s111 = sadd.s32 %s110, 1
    %p114 = scmp.eq.s32.totalorder %s13, 1
    %p115 = scmp.ne.s32.totalorder %s110, %s112
    %p116 = scmp.eq.s32.totalorder %s13, 0
    %p117 = por %p115, %p116
    %p118 = scmp.ne.s32.totalorder %s110, %s112
    %p119 = scmp.eq.s32.totalorder %s18, 1
    %p120 = por %p118, %p119
    %p121 = scmp.ne.s32.totalorder %s112, %s113
    %p122 = scmp.eq.s32.totalorder %s18, 0
    %p123 = por %p121, %p122
    %p124 = scmp.ne.s32.totalorder %s112, %s113
    %p125 = scmp.eq.s32.totalorder %s19, 1
    %p126 = por %p124, %p125
    %p128 = scmp.ne.s32.totalorder %s113, %s127
    %p129 = scmp.eq.s32.totalorder %s19, 0
    %p130 = por %p128, %p129
    %s132 = sadd.s32 %s131, 1
    %p135 = scmp.eq.s32.totalorder %s13, 1
    %p136 = scmp.ne.s32.totalorder %s131, %s133
    %p137 = scmp.eq.s32.totalorder %s13, 0
    %p138 = por %p136, %p137
    %p139 = scmp.ne.s32.totalorder %s131, %s133
    %p140 = scmp.eq.s32.totalorder %s18, 1
    %p141 = por %p139, %p140
    %p142 = scmp.ne.s32.totalorder %s133, %s134
    %p143 = scmp.eq.s32.totalorder %s18, 0
    %p144 = por %p142, %p143
    %p145 = scmp.ne.s32.totalorder %s133, %s134
    %p146 = scmp.eq.s32.totalorder %s19, 1
    %p147 = por %p145, %p146
    %p149 = scmp.ne.s32.totalorder %s134, %s148
    %p150 = scmp.eq.s32.totalorder %s19, 0
    %p151 = por %p149, %p150
    %s153 = sadd.s32 %s152, 1
    %p156 = scmp.eq.s32.totalorder %s13, 1
    %p157 = scmp.ne.s32.totalorder %s152, %s154
    %p158 = scmp.eq.s32.totalorder %s13, 0
    %p159 = por %p157, %p158
    %p160 = scmp.ne.s32.totalorder %s152, %s154
    %p161 = scmp.eq.s32.totalorder %s18, 1
    %p162 = por %p160, %p161
    %p163 = scmp.ne.s32.totalorder %s154, %s155
    %p164 = scmp.eq.s32.totalorder %s18, 0
    %p165 = por %p163, %p164
    %p166 = scmp.ne.s32.totalorder %s154, %s155
    %p167 = scmp.eq.s32.totalorder %s19, 1
    %p168 = por %p166, %p167
    %p170 = scmp.ne.s32.totalorder %s155, %s169
    %p171 = scmp.eq.s32.totalorder %s19, 0
    %p172 = por %p170, %p171
    %s173 = ssub.s32 %s13, %s20
    %p174 = scmp.eq.s32.totalorder %s173, 0
    %s176 = sadd.s32 %s175, 1
    %s177 = scalar_select %p174, %s175, %s176
    %p180 = pneg %p174
    %p181 = scmp.eq.s32.totalorder %s13, 1
    %p182 = por %p180, %p181
    %p183 = scmp.ne.s32.totalorder %s175, %s178
    %p184 = scmp.eq.s32.totalorder %s13, 0
    %p185 = por %p183, %p184
    %p186 = scmp.ne.s32.totalorder %s175, %s178
    %p187 = scmp.eq.s32.totalorder %s18, 1
    %p188 = por %p186, %p187
    %p189 = scmp.ne.s32.totalorder %s178, %s179
    %p190 = scmp.eq.s32.totalorder %s18, 0
    %p191 = por %p189, %p190
    %p192 = scmp.ne.s32.totalorder %s178, %s179
    %p193 = scmp.eq.s32.totalorder %s19, 1
    %p194 = por %p192, %p193
    %p196 = scmp.ne.s32.totalorder %s179, %s195
    %p197 = scmp.eq.s32.totalorder %s19, 0
    %p198 = por %p196, %p197
    %p199 = scmp.le.s32.totalorder 1, %s13
    %p200 = scmp.lt.s32.totalorder %s13, 3
    %p201 = pnand %p199, %p200
    %p202 = pneg %p201
    // Predicated region
    $region9: #{tpu_custom_call.1} parent=5 // pred_check
      _
    $region10: #{tpu_custom_call.1} parent=5 // pred_check_branch
      %204 = sbr.rel (%p201) target = $region12
    $region11: #{tpu_custom_call.1} parent=5 // pred_region
      %s205 = ssub.s32 %s13, 1
      // Predicated region
      $region13: #{tpu_custom_call.1} parent=11 // pred_check
        %p206 = pneg %p60
      $region14: #{tpu_custom_call.1} parent=11 // pred_check_branch
        %208 = sbr.rel (%p206) target = $region16
      $region15: #{tpu_custom_call.1} parent=11 // pred_region
        _
      $region16: #{tpu_custom_call.1} parent=11 // pred_fallthru
        _
      // Predicated region
      $region17: #{tpu_custom_call.1} parent=11 // pred_check
        %p209 = pneg %p81
      $region18: #{tpu_custom_call.1} parent=11 // pred_check_branch
        %211 = sbr.rel (%p209) target = $region20
      $region19: #{tpu_custom_call.1} parent=11 // pred_region
        _
      $region20: #{tpu_custom_call.1} parent=11 // pred_fallthru
        _
      // Predicated region
      $region21: #{tpu_custom_call.1} parent=11 // pred_check
        %p212 = pneg %p102
      $region22: #{tpu_custom_call.1} parent=11 // pred_check_branch
        %214 = sbr.rel (%p212) target = $region24
      $region23: #{tpu_custom_call.1} parent=11 // pred_region
        _
      $region24: #{tpu_custom_call.1} parent=11 // pred_fallthru
        _
      // Predicated region
      $region25: #{tpu_custom_call.1} parent=11 // pred_check
        %p215 = pneg %p123
      $region26: #{tpu_custom_call.1} parent=11 // pred_check_branch
        %217 = sbr.rel (%p215) target = $region28
      $region27: #{tpu_custom_call.1} parent=11 // pred_region
        _
      $region28: #{tpu_custom_call.1} parent=11 // pred_fallthru
        _
      // Predicated region
      $region29: #{tpu_custom_call.1} parent=11 // pred_check
        %p218 = pneg %p144
      $region30: #{tpu_custom_call.1} parent=11 // pred_check_branch
        %220 = sbr.rel (%p218) target = $region32
      $region31: #{tpu_custom_call.1} parent=11 // pred_region
        _
      $region32: #{tpu_custom_call.1} parent=11 // pred_fallthru
        _
      // Predicated region
      $region33: #{tpu_custom_call.1} parent=11 // pred_check
        %p221 = pneg %p165
      $region34: #{tpu_custom_call.1} parent=11 // pred_check_branch
        %223 = sbr.rel (%p221) target = $region36
      $region35: #{tpu_custom_call.1} parent=11 // pred_region
        _
      $region36: #{tpu_custom_call.1} parent=11 // pred_fallthru
        _
    $region12: #{tpu_custom_call.1} parent=5 // pred_fallthru
      _
    %p224 = scmp.lt.s32.totalorder %s13, 2
    // Predicated region
    $region37: #{tpu_custom_call.1} parent=5 // pred_check
      %p225 = pneg %p224
    $region38: #{tpu_custom_call.1} parent=5 // pred_check_branch
      %227 = sbr.rel (%p225) target = $region40
    $region39: #{tpu_custom_call.1} parent=5 // pred_region
      // Predicated region
      $region41: #{tpu_custom_call.1} parent=39 // pred_check
        %p228 = pneg %p33
      $region42: #{tpu_custom_call.1} parent=39 // pred_check_branch
        %230 = sbr.rel (%p228) target = $region44
      $region43: #{tpu_custom_call.1} parent=39 // pred_region
        %p231 = scmp.lt.s32.totalorder %s13, 1
        %s232 = scalar_select %p231, %s13, 1
        %s233 = scalar_lea.vmem %s0, %s232
      $region44: #{tpu_custom_call.1} parent=39 // pred_fallthru
        _
    $region40: #{tpu_custom_call.1} parent=5 // pred_fallthru
      _
    %p234 = scmp.le.s32.totalorder 1, %s13
    %p235 = scmp.lt.s32.totalorder %s13, 3
    %p236 = pnand %p234, %p235
    %p237 = pneg %p236
    // Predicated region
    $region45: #{tpu_custom_call.1} parent=5 // pred_check
      _
    $region46: #{tpu_custom_call.1} parent=5 // pred_check_branch
      %239 = sbr.rel (%p236) target = $region48
    $region47: #{tpu_custom_call.1} parent=5 // pred_region
      %s240 = ssub.s32 %s13, 1
      %p241 = scmp.lt.s32.totalorder %s18, 1
      %s242 = scalar_select %p241, %s18, 1
      %s243 = scalar_lea.vmem %s0, %s242
      %p244 = pneg %p39
      %p245 = pneg %p36
      %p246 = pneg %p60
      %p247 = pneg %p57
      %p248 = pneg %p81
      %p249 = pneg %p78
      %p250 = pneg %p102
      %p251 = pneg %p99
      %p252 = pneg %p123
      %p253 = pneg %p120
      %p254 = pneg %p144
      %p255 = pneg %p141
      %p256 = pneg %p165
      %p257 = pneg %p162
      %p258 = pneg %p191
      %p259 = pneg %p188
      %p260 = scmp.lt.s32.totalorder %s18, 1
      %s261 = scalar_select %p260, %s18, 1
      %s262 = smul.addr %s261, 16
      %s263 = smul.addr %s262, 8
      %s264 = scalar_lea.vmem %s7, %s263
      %p265 = scmp.lt.s32.totalorder %s18, 1
      %s266 = scalar_select %p265, %s18, 1
      %s267 = scalar_lea.vmem %s0, %s266
      %p268 = scmp.lt.s32.totalorder %s18, 1
      %s269 = scalar_select %p268, %s18, 1
      %s270 = smul.addr %s269, 16
      %s271 = smul.addr %s270, 8
      %s272 = scalar_lea.vmem %s7, %s271
      %v273 = vld [vmem:[%s267] sm:$0x1]
      %v274 = vld [vmem:[%s1] sm:$0xff]
      %v275 = vld [vmem:[%s1 + $0x8] sm:$0xff]
      %v276 = vld [vmem:[%s1 + $0x10] sm:$0xff]
      %v278 = vlaneseq
      %v279 = vshrl.u32 %v278, 7
      %v280 = vsub.s32 0, %v279
      %v281 = vrot.slane %v273, %v280
      %v283 = vmul.f32 %v274, %v281
      %v284 = vmul.f32 %v275, %v281
      %v285 = vmul.f32 %v276, %v281
      %vm286 = vcmask 834560
      %v287 = vsel %vm286, %v283, 0.0
      %288 = vadd.xlane.f32.xlu0 %v287
      %v289 = vpop.xlane.xlu0 %288
      %v290 = vsel %vm286, %v284, 0.0
      %291 = vadd.xlane.f32.xlu0 %v290
      %v292 = vpop.xlane.xlu0 %291
      %v293 = vsel %vm286, %v285, 0.0
      %294 = vadd.xlane.f32.xlu0 %v293
      %v295 = vpop.xlane.xlu0 %294
      %v296 = vld [vmem:[%s2] sm:$0xff]
      %v297 = vld [vmem:[%s2 + $0x8] sm:$0xff]
      %v298 = vld [vmem:[%s2 + $0x10] sm:$0xff]
      %v299 = vadd.f32 %v289, %v296
      %v300 = vadd.f32 %v292, %v297
      %v301 = vadd.f32 %v295, %v298
      %v302 = vxor.u32 %v299, 2147483648
      %v303 = vxor.u32 %v300, 2147483648
      %v304 = vxor.u32 %v301, 2147483648
      %v305 = vmul.f32 %v302, 1.442695
      %v306 = vpow.pop %v305
      %v307 = vmul.f32 %v303, 1.442695
      %v308 = vpow.pop %v307
      %v309 = vmul.f32 %v304, 1.442695
      %v310 = vpow.pop %v309
      %v311 = vadd.f32 %v306, 1.0
      %v312 = vadd.f32 %v308, 1.0
      %v313 = vadd.f32 %v310, 1.0
      %v314 = vrcp.pop %v311
      %v315 = vmul.f32 1.0, %v314
      %v316 = vrcp.pop %v312
      %v317 = vmul.f32 1.0, %v316
      %v318 = vrcp.pop %v313
      %v319 = vmul.f32 1.0, %v318
      %v320 = vld [vmem:[%s3] sm:$0xff]
      %v321 = vld [vmem:[%s3 + $0x8] sm:$0xff]
      %v322 = vld [vmem:[%s3 + $0x10] sm:$0xff]
      %324 = vset.pattern.permute.xlu0 0
      %325 = vperm.xlu0 %324, %v315
      %v326 = vpop.permute.xlu0 %325
      %329 = vset.pattern.permute.xlu0 0
      %330 = vperm.xlu0 %329, %v317
      %v331 = vpop.permute.xlu0 %330
      %334 = vset.pattern.permute.xlu0 0
      %335 = vperm.xlu0 %334, %v319
      %v336 = vpop.permute.xlu0 %335
      %v338 = vmul.f32 %v320, %v326
      %v339 = vmul.f32 %v321, %v331
      %v340 = vmul.f32 %v322, %v336
      %v341 = vsel %vm286, %v338, 0.0
      %v342 = vsel %vm286, %v339, 0.0
      %v343 = vadd.f32 %v341, %v342
      %v344 = vsel %vm286, %v340, 0.0
      %v345 = vadd.f32 %v343, %v344
      %v346 = vrot.slane %v345, 4
      %v347 = vadd.f32 %v345, %v346
      %v348 = vrot.slane %v347, 2
      %v349 = vadd.f32 %v347, %v348
      %v350 = vrot.slane %v349, 1
      %v351 = vadd.f32 %v349, %v350
      %v352 = vld [vmem:[%s4] sm:$0x1]
      %v353 = vadd.f32 %v351, %v352
      %v354 = vxor.u32 %v353, 2147483648
      %v355 = vmul.f32 %v354, 1.442695
      %v356 = vpow.pop %v355
      %v357 = vadd.f32 %v356, 1.0
      %v358 = vrcp.pop %v357
      %v359 = vmul.f32 1.0, %v358
      %v360 = vmul.f32 %v273, %v359
      %v361 = vld [vmem:[%s5] sm:$0xff]
      %v362 = vld [vmem:[%s5 + $0x8] sm:$0xff]
      %v363 = vld [vmem:[%s5 + $0x10] sm:$0xff]
      %v364 = vld [vmem:[%s5 + $0x18] sm:$0xff]
      %v365 = vld [vmem:[%s5 + $0x20] sm:$0xff]
      %v366 = vld [vmem:[%s5 + $0x28] sm:$0xff]
      %v367 = vld [vmem:[%s5 + $0x30] sm:$0xff]
      %v368 = vld [vmem:[%s5 + $0x38] sm:$0xff]
      %v369 = vld [vmem:[%s5 + $0x40] sm:$0xff]
      %v370 = vld [vmem:[%s5 + $0x48] sm:$0xff]
      %v371 = vld [vmem:[%s5 + $0x50] sm:$0xff]
      %v372 = vld [vmem:[%s5 + $0x58] sm:$0xff]
      %v373 = vld [vmem:[%s5 + $0x60] sm:$0xff]
      %v374 = vld [vmem:[%s5 + $0x68] sm:$0xff]
      %v375 = vld [vmem:[%s5 + $0x70] sm:$0xff]
      %v376 = vld [vmem:[%s5 + $0x78] sm:$0xff]
      %378 = vset.pattern.permute.xlu0 0
      %379 = vperm.xlu0 %378, %v361
      %v380 = vpop.permute.xlu0 %379
      %383 = vset.pattern.permute.xlu0 0
      %384 = vperm.xlu0 %383, %v362
      %v385 = vpop.permute.xlu0 %384
      %388 = vset.pattern.permute.xlu0 0
      %389 = vperm.xlu0 %388, %v363
      %v390 = vpop.permute.xlu0 %389
      %393 = vset.pattern.permute.xlu0 0
      %394 = vperm.xlu0 %393, %v364
      %v395 = vpop.permute.xlu0 %394
      %398 = vset.pattern.permute.xlu0 0
      %399 = vperm.xlu0 %398, %v365
      %v400 = vpop.permute.xlu0 %399
      %403 = vset.pattern.permute.xlu0 0
      %404 = vperm.xlu0 %403, %v366
      %v405 = vpop.permute.xlu0 %404
      %408 = vset.pattern.permute.xlu0 0
      %409 = vperm.xlu0 %408, %v367
      %v410 = vpop.permute.xlu0 %409
      %413 = vset.pattern.permute.xlu0 0
      %414 = vperm.xlu0 %413, %v368
      %v415 = vpop.permute.xlu0 %414
      %418 = vset.pattern.permute.xlu0 0
      %419 = vperm.xlu0 %418, %v369
      %v420 = vpop.permute.xlu0 %419
      %423 = vset.pattern.permute.xlu0 0
      %424 = vperm.xlu0 %423, %v370
      %v425 = vpop.permute.xlu0 %424
      %428 = vset.pattern.permute.xlu0 0
      %429 = vperm.xlu0 %428, %v371
      %v430 = vpop.permute.xlu0 %429
      %433 = vset.pattern.permute.xlu0 0
      %434 = vperm.xlu0 %433, %v372
      %v435 = vpop.permute.xlu0 %434
      %438 = vset.pattern.permute.xlu0 0
      %439 = vperm.xlu0 %438, %v373
      %v440 = vpop.permute.xlu0 %439
      %443 = vset.pattern.permute.xlu0 0
      %444 = vperm.xlu0 %443, %v374
      %v445 = vpop.permute.xlu0 %444
      %448 = vset.pattern.permute.xlu0 0
      %449 = vperm.xlu0 %448, %v375
      %v450 = vpop.permute.xlu0 %449
      %453 = vset.pattern.permute.xlu0 0
      %454 = vperm.xlu0 %453, %v376
      %v455 = vpop.permute.xlu0 %454
      %v458 = vlaneseq
      %v459 = vshrl.u32 %v458, 7
      %v460 = vsub.s32 0, %v459
      %v461 = vrot.slane %v360, %v460
      %v463 = vmul.f32 %v380, %v461
      %v464 = vmul.f32 %v385, %v461
      %v465 = vmul.f32 %v390, %v461
      %v466 = vmul.f32 %v395, %v461
      %v467 = vmul.f32 %v400, %v461
      %v468 = vmul.f32 %v405, %v461
      %v469 = vmul.f32 %v410, %v461
      %v470 = vmul.f32 %v415, %v461
      %v471 = vmul.f32 %v420, %v461
      %v472 = vmul.f32 %v425, %v461
      %v473 = vmul.f32 %v430, %v461
      %v474 = vmul.f32 %v435, %v461
      %v475 = vmul.f32 %v440, %v461
      %v476 = vmul.f32 %v445, %v461
      %v477 = vmul.f32 %v450, %v461
      %v478 = vmul.f32 %v455, %v461
      %479 = vset.pattern.permute.xlu0 1
      %480 = vperm.xlu0 %479, %v361
      %v481 = vpop.permute.xlu0 %480
      %483 = vset.pattern.permute.xlu0 1
      %484 = vperm.xlu0 %483, %v362
      %v485 = vpop.permute.xlu0 %484
      %487 = vset.pattern.permute.xlu0 1
      %488 = vperm.xlu0 %487, %v363
      %v489 = vpop.permute.xlu0 %488
      %491 = vset.pattern.permute.xlu0 1
      %492 = vperm.xlu0 %491, %v364
      %v493 = vpop.permute.xlu0 %492
      %495 = vset.pattern.permute.xlu0 1
      %496 = vperm.xlu0 %495, %v365
      %v497 = vpop.permute.xlu0 %496
      %499 = vset.pattern.permute.xlu0 1
      %500 = vperm.xlu0 %499, %v366
      %v501 = vpop.permute.xlu0 %500
      %503 = vset.pattern.permute.xlu0 1
      %504 = vperm.xlu0 %503, %v367
      %v505 = vpop.permute.xlu0 %504
      %507 = vset.pattern.permute.xlu0 1
      %508 = vperm.xlu0 %507, %v368
      %v509 = vpop.permute.xlu0 %508
      %511 = vset.pattern.permute.xlu0 1
      %512 = vperm.xlu0 %511, %v369
      %v513 = vpop.permute.xlu0 %512
      %515 = vset.pattern.permute.xlu0 1
      %516 = vperm.xlu0 %515, %v370
      %v517 = vpop.permute.xlu0 %516
      %519 = vset.pattern.permute.xlu0 1
      %520 = vperm.xlu0 %519, %v371
      %v521 = vpop.permute.xlu0 %520
      %523 = vset.pattern.permute.xlu0 1
      %524 = vperm.xlu0 %523, %v372
      %v525 = vpop.permute.xlu0 %524
      %527 = vset.pattern.permute.xlu0 1
      %528 = vperm.xlu0 %527, %v373
      %v529 = vpop.permute.xlu0 %528
      %531 = vset.pattern.permute.xlu0 1
      %532 = vperm.xlu0 %531, %v374
      %v533 = vpop.permute.xlu0 %532
      %535 = vset.pattern.permute.xlu0 1
      %536 = vperm.xlu0 %535, %v375
      %v537 = vpop.permute.xlu0 %536
      %539 = vset.pattern.permute.xlu0 1
      %540 = vperm.xlu0 %539, %v376
      %v541 = vpop.permute.xlu0 %540
      %v543 = vmul.f32 %v481, %v461
      %v544 = vmul.f32 %v485, %v461
      %v545 = vmul.f32 %v489, %v461
      %v546 = vmul.f32 %v493, %v461
      %v547 = vmul.f32 %v497, %v461
      %v548 = vmul.f32 %v501, %v461
      %v549 = vmul.f32 %v505, %v461
      %v550 = vmul.f32 %v509, %v461
      %v551 = vmul.f32 %v513, %v461
      %v552 = vmul.f32 %v517, %v461
      %v553 = vmul.f32 %v521, %v461
      %v554 = vmul.f32 %v525, %v461
      %v555 = vmul.f32 %v529, %v461
      %v556 = vmul.f32 %v533, %v461
      %v557 = vmul.f32 %v537, %v461
      %v558 = vmul.f32 %v541, %v461
      %575 = vrot.lane.b32.xlu0 %v543, 127
      %v576 = vpop.permute.xlu0 %575
      %577 = vrot.lane.b32.xlu0 %v544, 127
      %v578 = vpop.permute.xlu0 %577
      %579 = vrot.lane.b32.xlu0 %v545, 127
      %v580 = vpop.permute.xlu0 %579
      %581 = vrot.lane.b32.xlu0 %v546, 127
      %v582 = vpop.permute.xlu0 %581
      %583 = vrot.lane.b32.xlu0 %v547, 127
      %v584 = vpop.permute.xlu0 %583
      %585 = vrot.lane.b32.xlu0 %v548, 127
      %v586 = vpop.permute.xlu0 %585
      %587 = vrot.lane.b32.xlu0 %v549, 127
      %v588 = vpop.permute.xlu0 %587
      %589 = vrot.lane.b32.xlu0 %v550, 127
      %v590 = vpop.permute.xlu0 %589
      %591 = vrot.lane.b32.xlu0 %v551, 127
      %v592 = vpop.permute.xlu0 %591
      %593 = vrot.lane.b32.xlu0 %v552, 127
      %v594 = vpop.permute.xlu0 %593
      %595 = vrot.lane.b32.xlu0 %v553, 127
      %v596 = vpop.permute.xlu0 %595
      %597 = vrot.lane.b32.xlu0 %v554, 127
      %v598 = vpop.permute.xlu0 %597
      %599 = vrot.lane.b32.xlu0 %v555, 127
      %v600 = vpop.permute.xlu0 %599
      %601 = vrot.lane.b32.xlu0 %v556, 127
      %v602 = vpop.permute.xlu0 %601
      %603 = vrot.lane.b32.xlu0 %v557, 127
      %v604 = vpop.permute.xlu0 %603
      %605 = vrot.lane.b32.xlu0 %v558, 127
      %v606 = vpop.permute.xlu0 %605
      %v623 = vadd.f32 %v463, %v576
      %v624 = vadd.f32 %v464, %v578
      %v625 = vadd.f32 %v465, %v580
      %v626 = vadd.f32 %v466, %v582
      %v627 = vadd.f32 %v467, %v584
      %v628 = vadd.f32 %v468, %v586
      %v629 = vadd.f32 %v469, %v588
      %v630 = vadd.f32 %v470, %v590
      %v631 = vadd.f32 %v471, %v592
      %v632 = vadd.f32 %v472, %v594
      %v633 = vadd.f32 %v473, %v596
      %v634 = vadd.f32 %v474, %v598
      %v635 = vadd.f32 %v475, %v600
      %v636 = vadd.f32 %v476, %v602
      %v637 = vadd.f32 %v477, %v604
      %v638 = vadd.f32 %v478, %v606
      %639 = vset.pattern.permute.xlu0 2
      %640 = vperm.xlu0 %639, %v361
      %v641 = vpop.permute.xlu0 %640
      %643 = vset.pattern.permute.xlu0 2
      %644 = vperm.xlu0 %643, %v362
      %v645 = vpop.permute.xlu0 %644
      %647 = vset.pattern.permute.xlu0 2
      %648 = vperm.xlu0 %647, %v363
      %v649 = vpop.permute.xlu0 %648
      %651 = vset.pattern.permute.xlu0 2
      %652 = vperm.xlu0 %651, %v364
      %v653 = vpop.permute.xlu0 %652
      %655 = vset.pattern.permute.xlu0 2
      %656 = vperm.xlu0 %655, %v365
      %v657 = vpop.permute.xlu0 %656
      %659 = vset.pattern.permute.xlu0 2
      %660 = vperm.xlu0 %659, %v366
      %v661 = vpop.permute.xlu0 %660
      %663 = vset.pattern.permute.xlu0 2
      %664 = vperm.xlu0 %663, %v367
      %v665 = vpop.permute.xlu0 %664
      %667 = vset.pattern.permute.xlu0 2
      %668 = vperm.xlu0 %667, %v368
      %v669 = vpop.permute.xlu0 %668
      %671 = vset.pattern.permute.xlu0 2
      %672 = vperm.xlu0 %671, %v369
      %v673 = vpop.permute.xlu0 %672
      %675 = vset.pattern.permute.xlu0 2
      %676 = vperm.xlu0 %675, %v370
      %v677 = vpop.permute.xlu0 %676
      %679 = vset.pattern.permute.xlu0 2
      %680 = vperm.xlu0 %679, %v371
      %v681 = vpop.permute.xlu0 %680
      %683 = vset.pattern.permute.xlu0 2
      %684 = vperm.xlu0 %683, %v372
      %v685 = vpop.permute.xlu0 %684
      %687 = vset.pattern.permute.xlu0 2
      %688 = vperm.xlu0 %687, %v373
      %v689 = vpop.permute.xlu0 %688
      %691 = vset.pattern.permute.xlu0 2
      %692 = vperm.xlu0 %691, %v374
      %v693 = vpop.permute.xlu0 %692
      %695 = vset.pattern.permute.xlu0 2
      %696 = vperm.xlu0 %695, %v375
      %v697 = vpop.permute.xlu0 %696
      %699 = vset.pattern.permute.xlu0 2
      %700 = vperm.xlu0 %699, %v376
      %v701 = vpop.permute.xlu0 %700
      %v703 = vmul.f32 %v641, %v461
      %v704 = vmul.f32 %v645, %v461
      %v705 = vmul.f32 %v649, %v461
      %v706 = vmul.f32 %v653, %v461
      %v707 = vmul.f32 %v657, %v461
      %v708 = vmul.f32 %v661, %v461
      %v709 = vmul.f32 %v665, %v461
      %v710 = vmul.f32 %v669, %v461
      %v711 = vmul.f32 %v673, %v461
      %v712 = vmul.f32 %v677, %v461
      %v713 = vmul.f32 %v681, %v461
      %v714 = vmul.f32 %v685, %v461
      %v715 = vmul.f32 %v689, %v461
      %v716 = vmul.f32 %v693, %v461
      %v717 = vmul.f32 %v697, %v461
      %v718 = vmul.f32 %v701, %v461
      %735 = vrot.lane.b32.xlu0 %v703, 126
      %v736 = vpop.permute.xlu0 %735
      %737 = vrot.lane.b32.xlu0 %v704, 126
      %v738 = vpop.permute.xlu0 %737
      %739 = vrot.lane.b32.xlu0 %v705, 126
      %v740 = vpop.permute.xlu0 %739
      %741 = vrot.lane.b32.xlu0 %v706, 126
      %v742 = vpop.permute.xlu0 %741
      %743 = vrot.lane.b32.xlu0 %v707, 126
      %v744 = vpop.permute.xlu0 %743
      %745 = vrot.lane.b32.xlu0 %v708, 126
      %v746 = vpop.permute.xlu0 %745
      %747 = vrot.lane.b32.xlu0 %v709, 126
      %v748 = vpop.permute.xlu0 %747
      %749 = vrot.lane.b32.xlu0 %v710, 126
      %v750 = vpop.permute.xlu0 %749
      %751 = vrot.lane.b32.xlu0 %v711, 126
      %v752 = vpop.permute.xlu0 %751
      %753 = vrot.lane.b32.xlu0 %v712, 126
      %v754 = vpop.permute.xlu0 %753
      %755 = vrot.lane.b32.xlu0 %v713, 126
      %v756 = vpop.permute.xlu0 %755
      %757 = vrot.lane.b32.xlu0 %v714, 126
      %v758 = vpop.permute.xlu0 %757
      %759 = vrot.lane.b32.xlu0 %v715, 126
      %v760 = vpop.permute.xlu0 %759
      %761 = vrot.lane.b32.xlu0 %v716, 126
      %v762 = vpop.permute.xlu0 %761
      %763 = vrot.lane.b32.xlu0 %v717, 126
      %v764 = vpop.permute.xlu0 %763
      %765 = vrot.lane.b32.xlu0 %v718, 126
      %v766 = vpop.permute.xlu0 %765
      %v783 = vadd.f32 %v623, %v736
      %v784 = vadd.f32 %v624, %v738
      %v785 = vadd.f32 %v625, %v740
      %v786 = vadd.f32 %v626, %v742
      %v787 = vadd.f32 %v627, %v744
      %v788 = vadd.f32 %v628, %v746
      %v789 = vadd.f32 %v629, %v748
      %v790 = vadd.f32 %v630, %v750
      %v791 = vadd.f32 %v631, %v752
      %v792 = vadd.f32 %v632, %v754
      %v793 = vadd.f32 %v633, %v756
      %v794 = vadd.f32 %v634, %v758
      %v795 = vadd.f32 %v635, %v760
      %v796 = vadd.f32 %v636, %v762
      %v797 = vadd.f32 %v637, %v764
      %v798 = vadd.f32 %v638, %v766
      %799 = vset.pattern.permute.xlu0 3
      %800 = vperm.xlu0 %799, %v361
      %v801 = vpop.permute.xlu0 %800
      %803 = vset.pattern.permute.xlu0 3
      %804 = vperm.xlu0 %803, %v362
      %v805 = vpop.permute.xlu0 %804
      %807 = vset.pattern.permute.xlu0 3
      %808 = vperm.xlu0 %807, %v363
      %v809 = vpop.permute.xlu0 %808
      %811 = vset.pattern.permute.xlu0 3
      %812 = vperm.xlu0 %811, %v364
      %v813 = vpop.permute.xlu0 %812
      %815 = vset.pattern.permute.xlu0 3
      %816 = vperm.xlu0 %815, %v365
      %v817 = vpop.permute.xlu0 %816
      %819 = vset.pattern.permute.xlu0 3
      %820 = vperm.xlu0 %819, %v366
      %v821 = vpop.permute.xlu0 %820
      %823 = vset.pattern.permute.xlu0 3
      %824 = vperm.xlu0 %823, %v367
      %v825 = vpop.permute.xlu0 %824
      %827 = vset.pattern.permute.xlu0 3
      %828 = vperm.xlu0 %827, %v368
      %v829 = vpop.permute.xlu0 %828
      %831 = vset.pattern.permute.xlu0 3
      %832 = vperm.xlu0 %831, %v369
      %v833 = vpop.permute.xlu0 %832
      %835 = vset.pattern.permute.xlu0 3
      %836 = vperm.xlu0 %835, %v370
      %v837 = vpop.permute.xlu0 %836
      %839 = vset.pattern.permute.xlu0 3
      %840 = vperm.xlu0 %839, %v371
      %v841 = vpop.permute.xlu0 %840
      %843 = vset.pattern.permute.xlu0 3
      %844 = vperm.xlu0 %843, %v372
      %v845 = vpop.permute.xlu0 %844
      %847 = vset.pattern.permute.xlu0 3
      %848 = vperm.xlu0 %847, %v373
      %v849 = vpop.permute.xlu0 %848
      %851 = vset.pattern.permute.xlu0 3
      %852 = vperm.xlu0 %851, %v374
      %v853 = vpop.permute.xlu0 %852
      %855 = vset.pattern.permute.xlu0 3
      %856 = vperm.xlu0 %855, %v375
      %v857 = vpop.permute.xlu0 %856
      %859 = vset.pattern.permute.xlu0 3
      %860 = vperm.xlu0 %859, %v376
      %v861 = vpop.permute.xlu0 %860
      %v863 = vmul.f32 %v801, %v461
      %v864 = vmul.f32 %v805, %v461
      %v865 = vmul.f32 %v809, %v461
      %v866 = vmul.f32 %v813, %v461
      %v867 = vmul.f32 %v817, %v461
      %v868 = vmul.f32 %v821, %v461
      %v869 = vmul.f32 %v825, %v461
      %v870 = vmul.f32 %v829, %v461
      %v871 = vmul.f32 %v833, %v461
      %v872 = vmul.f32 %v837, %v461
      %v873 = vmul.f32 %v841, %v461
      %v874 = vmul.f32 %v845, %v461
      %v875 = vmul.f32 %v849, %v461
      %v876 = vmul.f32 %v853, %v461
      %v877 = vmul.f32 %v857, %v461
      %v878 = vmul.f32 %v861, %v461
      %895 = vrot.lane.b32.xlu0 %v863, 125
      %v896 = vpop.permute.xlu0 %895
      %897 = vrot.lane.b32.xlu0 %v864, 125
      %v898 = vpop.permute.xlu0 %897
      %899 = vrot.lane.b32.xlu0 %v865, 125
      %v900 = vpop.permute.xlu0 %899
      %901 = vrot.lane.b32.xlu0 %v866, 125
      %v902 = vpop.permute.xlu0 %901
      %903 = vrot.lane.b32.xlu0 %v867, 125
      %v904 = vpop.permute.xlu0 %903
      %905 = vrot.lane.b32.xlu0 %v868, 125
      %v906 = vpop.permute.xlu0 %905
      %907 = vrot.lane.b32.xlu0 %v869, 125
      %v908 = vpop.permute.xlu0 %907
      %909 = vrot.lane.b32.xlu0 %v870, 125
      %v910 = vpop.permute.xlu0 %909
      %911 = vrot.lane.b32.xlu0 %v871, 125
      %v912 = vpop.permute.xlu0 %911
      %913 = vrot.lane.b32.xlu0 %v872, 125
      %v914 = vpop.permute.xlu0 %913
      %915 = vrot.lane.b32.xlu0 %v873, 125
      %v916 = vpop.permute.xlu0 %915
      %917 = vrot.lane.b32.xlu0 %v874, 125
      %v918 = vpop.permute.xlu0 %917
      %919 = vrot.lane.b32.xlu0 %v875, 125
      %v920 = vpop.permute.xlu0 %919
      %921 = vrot.lane.b32.xlu0 %v876, 125
      %v922 = vpop.permute.xlu0 %921
      %923 = vrot.lane.b32.xlu0 %v877, 125
      %v924 = vpop.permute.xlu0 %923
      %925 = vrot.lane.b32.xlu0 %v878, 125
      %v926 = vpop.permute.xlu0 %925
      %v943 = vadd.f32 %v783, %v896
      %v944 = vadd.f32 %v784, %v898
      %v945 = vadd.f32 %v785, %v900
      %v946 = vadd.f32 %v786, %v902
      %v947 = vadd.f32 %v787, %v904
      %v948 = vadd.f32 %v788, %v906
      %v949 = vadd.f32 %v789, %v908
      %v950 = vadd.f32 %v790, %v910
      %v951 = vadd.f32 %v791, %v912
      %v952 = vadd.f32 %v792, %v914
      %v953 = vadd.f32 %v793, %v916
      %v954 = vadd.f32 %v794, %v918
      %v955 = vadd.f32 %v795, %v920
      %v956 = vadd.f32 %v796, %v922
      %v957 = vadd.f32 %v797, %v924
      %v958 = vadd.f32 %v798, %v926
      %959 = vset.pattern.permute.xlu0 4
      %960 = vperm.xlu0 %959, %v361
      %v961 = vpop.permute.xlu0 %960
      %963 = vset.pattern.permute.xlu0 4
      %964 = vperm.xlu0 %963, %v362
      %v965 = vpop.permute.xlu0 %964
      %967 = vset.pattern.permute.xlu0 4
      %968 = vperm.xlu0 %967, %v363
      %v969 = vpop.permute.xlu0 %968
      %971 = vset.pattern.permute.xlu0 4
      %972 = vperm.xlu0 %971, %v364
      %v973 = vpop.permute.xlu0 %972
      %975 = vset.pattern.permute.xlu0 4
      %976 = vperm.xlu0 %975, %v365
      %v977 = vpop.permute.xlu0 %976
      %979 = vset.pattern.permute.xlu0 4
      %980 = vperm.xlu0 %979, %v366
      %v981 = vpop.permute.xlu0 %980
      %983 = vset.pattern.permute.xlu0 4
      %984 = vperm.xlu0 %983, %v367
      %v985 = vpop.permute.xlu0 %984
      %987 = vset.pattern.permute.xlu0 4
      %988 = vperm.xlu0 %987, %v368
      %v989 = vpop.permute.xlu0 %988
      %991 = vset.pattern.permute.xlu0 4
      %992 = vperm.xlu0 %991, %v369
      %v993 = vpop.permute.xlu0 %992
      %995 = vset.pattern.permute.xlu0 4
      %996 = vperm.xlu0 %995, %v370
      %v997 = vpop.permute.xlu0 %996
      %999 = vset.pattern.permute.xlu0 4
      %1000 = vperm.xlu0 %999, %v371
      %v1001 = vpop.permute.xlu0 %1000
      %1003 = vset.pattern.permute.xlu0 4
      %1004 = vperm.xlu0 %1003, %v372
      %v1005 = vpop.permute.xlu0 %1004
      %1007 = vset.pattern.permute.xlu0 4
      %1008 = vperm.xlu0 %1007, %v373
      %v1009 = vpop.permute.xlu0 %1008
      %1011 = vset.pattern.permute.xlu0 4
      %1012 = vperm.xlu0 %1011, %v374
      %v1013 = vpop.permute.xlu0 %1012
      %1015 = vset.pattern.permute.xlu0 4
      %1016 = vperm.xlu0 %1015, %v375
      %v1017 = vpop.permute.xlu0 %1016
      %1019 = vset.pattern.permute.xlu0 4
      %1020 = vperm.xlu0 %1019, %v376
      %v1021 = vpop.permute.xlu0 %1020
      %v1023 = vmul.f32 %v961, %v461
      %v1024 = vmul.f32 %v965, %v461
      %v1025 = vmul.f32 %v969, %v461
      %v1026 = vmul.f32 %v973, %v461
      %v1027 = vmul.f32 %v977, %v461
      %v1028 = vmul.f32 %v981, %v461
      %v1029 = vmul.f32 %v985, %v461
      %v1030 = vmul.f32 %v989, %v461
      %v1031 = vmul.f32 %v993, %v461
      %v1032 = vmul.f32 %v997, %v461
      %v1033 = vmul.f32 %v1001, %v461
      %v1034 = vmul.f32 %v1005, %v461
      %v1035 = vmul.f32 %v1009, %v461
      %v1036 = vmul.f32 %v1013, %v461
      %v1037 = vmul.f32 %v1017, %v461
      %v1038 = vmul.f32 %v1021, %v461
      %1055 = vrot.lane.b32.xlu0 %v1023, 124
      %v1056 = vpop.permute.xlu0 %1055
      %1057 = vrot.lane.b32.xlu0 %v1024, 124
      %v1058 = vpop.permute.xlu0 %1057
      %1059 = vrot.lane.b32.xlu0 %v1025, 124
      %v1060 = vpop.permute.xlu0 %1059
      %1061 = vrot.lane.b32.xlu0 %v1026, 124
      %v1062 = vpop.permute.xlu0 %1061
      %1063 = vrot.lane.b32.xlu0 %v1027, 124
      %v1064 = vpop.permute.xlu0 %1063
      %1065 = vrot.lane.b32.xlu0 %v1028, 124
      %v1066 = vpop.permute.xlu0 %1065
      %1067 = vrot.lane.b32.xlu0 %v1029, 124
      %v1068 = vpop.permute.xlu0 %1067
      %1069 = vrot.lane.b32.xlu0 %v1030, 124
      %v1070 = vpop.permute.xlu0 %1069
      %1071 = vrot.lane.b32.xlu0 %v1031, 124
      %v1072 = vpop.permute.xlu0 %1071
      %1073 = vrot.lane.b32.xlu0 %v1032, 124
      %v1074 = vpop.permute.xlu0 %1073
      %1075 = vrot.lane.b32.xlu0 %v1033, 124
      %v1076 = vpop.permute.xlu0 %1075
      %1077 = vrot.lane.b32.xlu0 %v1034, 124
      %v1078 = vpop.permute.xlu0 %1077
      %1079 = vrot.lane.b32.xlu0 %v1035, 124
      %v1080 = vpop.permute.xlu0 %1079
      %1081 = vrot.lane.b32.xlu0 %v1036, 124
      %v1082 = vpop.permute.xlu0 %1081
      %1083 = vrot.lane.b32.xlu0 %v1037, 124
      %v1084 = vpop.permute.xlu0 %1083
      %1085 = vrot.lane.b32.xlu0 %v1038, 124
      %v1086 = vpop.permute.xlu0 %1085
      %v1103 = vadd.f32 %v943, %v1056
      %v1104 = vadd.f32 %v944, %v1058
      %v1105 = vadd.f32 %v945, %v1060
      %v1106 = vadd.f32 %v946, %v1062
      %v1107 = vadd.f32 %v947, %v1064
      %v1108 = vadd.f32 %v948, %v1066
      %v1109 = vadd.f32 %v949, %v1068
      %v1110 = vadd.f32 %v950, %v1070
      %v1111 = vadd.f32 %v951, %v1072
      %v1112 = vadd.f32 %v952, %v1074
      %v1113 = vadd.f32 %v953, %v1076
      %v1114 = vadd.f32 %v954, %v1078
      %v1115 = vadd.f32 %v955, %v1080
      %v1116 = vadd.f32 %v956, %v1082
      %v1117 = vadd.f32 %v957, %v1084
      %v1118 = vadd.f32 %v958, %v1086
      %1119 = vset.pattern.permute.xlu0 5
      %1120 = vperm.xlu0 %1119, %v361
      %v1121 = vpop.permute.xlu0 %1120
      %1123 = vset.pattern.permute.xlu0 5
      %1124 = vperm.xlu0 %1123, %v362
      %v1125 = vpop.permute.xlu0 %1124
      %1127 = vset.pattern.permute.xlu0 5
      %1128 = vperm.xlu0 %1127, %v363
      %v1129 = vpop.permute.xlu0 %1128
      %1131 = vset.pattern.permute.xlu0 5
      %1132 = vperm.xlu0 %1131, %v364
      %v1133 = vpop.permute.xlu0 %1132
      %1135 = vset.pattern.permute.xlu0 5
      %1136 = vperm.xlu0 %1135, %v365
      %v1137 = vpop.permute.xlu0 %1136
      %1139 = vset.pattern.permute.xlu0 5
      %1140 = vperm.xlu0 %1139, %v366
      %v1141 = vpop.permute.xlu0 %1140
      %1143 = vset.pattern.permute.xlu0 5
      %1144 = vperm.xlu0 %1143, %v367
      %v1145 = vpop.permute.xlu0 %1144
      %1147 = vset.pattern.permute.xlu0 5
      %1148 = vperm.xlu0 %1147, %v368
      %v1149 = vpop.permute.xlu0 %1148
      %1151 = vset.pattern.permute.xlu0 5
      %1152 = vperm.xlu0 %1151, %v369
      %v1153 = vpop.permute.xlu0 %1152
      %1155 = vset.pattern.permute.xlu0 5
      %1156 = vperm.xlu0 %1155, %v370
      %v1157 = vpop.permute.xlu0 %1156
      %1159 = vset.pattern.permute.xlu0 5
      %1160 = vperm.xlu0 %1159, %v371
      %v1161 = vpop.permute.xlu0 %1160
      %1163 = vset.pattern.permute.xlu0 5
      %1164 = vperm.xlu0 %1163, %v372
      %v1165 = vpop.permute.xlu0 %1164
      %1167 = vset.pattern.permute.xlu0 5
      %1168 = vperm.xlu0 %1167, %v373
      %v1169 = vpop.permute.xlu0 %1168
      %1171 = vset.pattern.permute.xlu0 5
      %1172 = vperm.xlu0 %1171, %v374
      %v1173 = vpop.permute.xlu0 %1172
      %1175 = vset.pattern.permute.xlu0 5
      %1176 = vperm.xlu0 %1175, %v375
      %v1177 = vpop.permute.xlu0 %1176
      %1179 = vset.pattern.permute.xlu0 5
      %1180 = vperm.xlu0 %1179, %v376
      %v1181 = vpop.permute.xlu0 %1180
      %v1183 = vmul.f32 %v1121, %v461
      %v1184 = vmul.f32 %v1125, %v461
      %v1185 = vmul.f32 %v1129, %v461
      %v1186 = vmul.f32 %v1133, %v461
      %v1187 = vmul.f32 %v1137, %v461
      %v1188 = vmul.f32 %v1141, %v461
      %v1189 = vmul.f32 %v1145, %v461
      %v1190 = vmul.f32 %v1149, %v461
      %v1191 = vmul.f32 %v1153, %v461
      %v1192 = vmul.f32 %v1157, %v461
      %v1193 = vmul.f32 %v1161, %v461
      %v1194 = vmul.f32 %v1165, %v461
      %v1195 = vmul.f32 %v1169, %v461
      %v1196 = vmul.f32 %v1173, %v461
      %v1197 = vmul.f32 %v1177, %v461
      %v1198 = vmul.f32 %v1181, %v461
      %1215 = vrot.lane.b32.xlu0 %v1183, 123
      %v1216 = vpop.permute.xlu0 %1215
      %1217 = vrot.lane.b32.xlu0 %v1184, 123
      %v1218 = vpop.permute.xlu0 %1217
      %1219 = vrot.lane.b32.xlu0 %v1185, 123
      %v1220 = vpop.permute.xlu0 %1219
      %1221 = vrot.lane.b32.xlu0 %v1186, 123
      %v1222 = vpop.permute.xlu0 %1221
      %1223 = vrot.lane.b32.xlu0 %v1187, 123
      %v1224 = vpop.permute.xlu0 %1223
      %1225 = vrot.lane.b32.xlu0 %v1188, 123
      %v1226 = vpop.permute.xlu0 %1225
      %1227 = vrot.lane.b32.xlu0 %v1189, 123
      %v1228 = vpop.permute.xlu0 %1227
      %1229 = vrot.lane.b32.xlu0 %v1190, 123
      %v1230 = vpop.permute.xlu0 %1229
      %1231 = vrot.lane.b32.xlu0 %v1191, 123
      %v1232 = vpop.permute.xlu0 %1231
      %1233 = vrot.lane.b32.xlu0 %v1192, 123
      %v1234 = vpop.permute.xlu0 %1233
      %1235 = vrot.lane.b32.xlu0 %v1193, 123
      %v1236 = vpop.permute.xlu0 %1235
      %1237 = vrot.lane.b32.xlu0 %v1194, 123
      %v1238 = vpop.permute.xlu0 %1237
      %1239 = vrot.lane.b32.xlu0 %v1195, 123
      %v1240 = vpop.permute.xlu0 %1239
      %1241 = vrot.lane.b32.xlu0 %v1196, 123
      %v1242 = vpop.permute.xlu0 %1241
      %1243 = vrot.lane.b32.xlu0 %v1197, 123
      %v1244 = vpop.permute.xlu0 %1243
      %1245 = vrot.lane.b32.xlu0 %v1198, 123
      %v1246 = vpop.permute.xlu0 %1245
      %v1263 = vadd.f32 %v1103, %v1216
      %v1264 = vadd.f32 %v1104, %v1218
      %v1265 = vadd.f32 %v1105, %v1220
      %v1266 = vadd.f32 %v1106, %v1222
      %v1267 = vadd.f32 %v1107, %v1224
      %v1268 = vadd.f32 %v1108, %v1226
      %v1269 = vadd.f32 %v1109, %v1228
      %v1270 = vadd.f32 %v1110, %v1230
      %v1271 = vadd.f32 %v1111, %v1232
      %v1272 = vadd.f32 %v1112, %v1234
      %v1273 = vadd.f32 %v1113, %v1236
      %v1274 = vadd.f32 %v1114, %v1238
      %v1275 = vadd.f32 %v1115, %v1240
      %v1276 = vadd.f32 %v1116, %v1242
      %v1277 = vadd.f32 %v1117, %v1244
      %v1278 = vadd.f32 %v1118, %v1246
      %1279 = vset.pattern.permute.xlu0 6
      %1280 = vperm.xlu0 %1279, %v361
      %v1281 = vpop.permute.xlu0 %1280
      %1283 = vset.pattern.permute.xlu0 6
      %1284 = vperm.xlu0 %1283, %v362
      %v1285 = vpop.permute.xlu0 %1284
      %1287 = vset.pattern.permute.xlu0 6
      %1288 = vperm.xlu0 %1287, %v363
      %v1289 = vpop.permute.xlu0 %1288
      %1291 = vset.pattern.permute.xlu0 6
      %1292 = vperm.xlu0 %1291, %v364
      %v1293 = vpop.permute.xlu0 %1292
      %1295 = vset.pattern.permute.xlu0 6
      %1296 = vperm.xlu0 %1295, %v365
      %v1297 = vpop.permute.xlu0 %1296
      %1299 = vset.pattern.permute.xlu0 6
      %1300 = vperm.xlu0 %1299, %v366
      %v1301 = vpop.permute.xlu0 %1300
      %1303 = vset.pattern.permute.xlu0 6
      %1304 = vperm.xlu0 %1303, %v367
      %v1305 = vpop.permute.xlu0 %1304
      %1307 = vset.pattern.permute.xlu0 6
      %1308 = vperm.xlu0 %1307, %v368
      %v1309 = vpop.permute.xlu0 %1308
      %1311 = vset.pattern.permute.xlu0 6
      %1312 = vperm.xlu0 %1311, %v369
      %v1313 = vpop.permute.xlu0 %1312
      %1315 = vset.pattern.permute.xlu0 6
      %1316 = vperm.xlu0 %1315, %v370
      %v1317 = vpop.permute.xlu0 %1316
      %1319 = vset.pattern.permute.xlu0 6
      %1320 = vperm.xlu0 %1319, %v371
      %v1321 = vpop.permute.xlu0 %1320
      %1323 = vset.pattern.permute.xlu0 6
      %1324 = vperm.xlu0 %1323, %v372
      %v1325 = vpop.permute.xlu0 %1324
      %1327 = vset.pattern.permute.xlu0 6
      %1328 = vperm.xlu0 %1327, %v373
      %v1329 = vpop.permute.xlu0 %1328
      %1331 = vset.pattern.permute.xlu0 6
      %1332 = vperm.xlu0 %1331, %v374
      %v1333 = vpop.permute.xlu0 %1332
      %1335 = vset.pattern.permute.xlu0 6
      %1336 = vperm.xlu0 %1335, %v375
      %v1337 = vpop.permute.xlu0 %1336
      %1339 = vset.pattern.permute.xlu0 6
      %1340 = vperm.xlu0 %1339, %v376
      %v1341 = vpop.permute.xlu0 %1340
      %v1343 = vmul.f32 %v1281, %v461
      %v1344 = vmul.f32 %v1285, %v461
      %v1345 = vmul.f32 %v1289, %v461
      %v1346 = vmul.f32 %v1293, %v461
      %v1347 = vmul.f32 %v1297, %v461
      %v1348 = vmul.f32 %v1301, %v461
      %v1349 = vmul.f32 %v1305, %v461
      %v1350 = vmul.f32 %v1309, %v461
      %v1351 = vmul.f32 %v1313, %v461
      %v1352 = vmul.f32 %v1317, %v461
      %v1353 = vmul.f32 %v1321, %v461
      %v1354 = vmul.f32 %v1325, %v461
      %v1355 = vmul.f32 %v1329, %v461
      %v1356 = vmul.f32 %v1333, %v461
      %v1357 = vmul.f32 %v1337, %v461
      %v1358 = vmul.f32 %v1341, %v461
      %1375 = vrot.lane.b32.xlu0 %v1343, 122
      %v1376 = vpop.permute.xlu0 %1375
      %1377 = vrot.lane.b32.xlu0 %v1344, 122
      %v1378 = vpop.permute.xlu0 %1377
      %1379 = vrot.lane.b32.xlu0 %v1345, 122
      %v1380 = vpop.permute.xlu0 %1379
      %1381 = vrot.lane.b32.xlu0 %v1346, 122
      %v1382 = vpop.permute.xlu0 %1381
      %1383 = vrot.lane.b32.xlu0 %v1347, 122
      %v1384 = vpop.permute.xlu0 %1383
      %1385 = vrot.lane.b32.xlu0 %v1348, 122
      %v1386 = vpop.permute.xlu0 %1385
      %1387 = vrot.lane.b32.xlu0 %v1349, 122
      %v1388 = vpop.permute.xlu0 %1387
      %1389 = vrot.lane.b32.xlu0 %v1350, 122
      %v1390 = vpop.permute.xlu0 %1389
      %1391 = vrot.lane.b32.xlu0 %v1351, 122
      %v1392 = vpop.permute.xlu0 %1391
      %1393 = vrot.lane.b32.xlu0 %v1352, 122
      %v1394 = vpop.permute.xlu0 %1393
      %1395 = vrot.lane.b32.xlu0 %v1353, 122
      %v1396 = vpop.permute.xlu0 %1395
      %1397 = vrot.lane.b32.xlu0 %v1354, 122
      %v1398 = vpop.permute.xlu0 %1397
      %1399 = vrot.lane.b32.xlu0 %v1355, 122
      %v1400 = vpop.permute.xlu0 %1399
      %1401 = vrot.lane.b32.xlu0 %v1356, 122
      %v1402 = vpop.permute.xlu0 %1401
      %1403 = vrot.lane.b32.xlu0 %v1357, 122
      %v1404 = vpop.permute.xlu0 %1403
      %1405 = vrot.lane.b32.xlu0 %v1358, 122
      %v1406 = vpop.permute.xlu0 %1405
      %v1423 = vadd.f32 %v1263, %v1376
      %v1424 = vadd.f32 %v1264, %v1378
      %v1425 = vadd.f32 %v1265, %v1380
      %v1426 = vadd.f32 %v1266, %v1382
      %v1427 = vadd.f32 %v1267, %v1384
      %v1428 = vadd.f32 %v1268, %v1386
      %v1429 = vadd.f32 %v1269, %v1388
      %v1430 = vadd.f32 %v1270, %v1390
      %v1431 = vadd.f32 %v1271, %v1392
      %v1432 = vadd.f32 %v1272, %v1394
      %v1433 = vadd.f32 %v1273, %v1396
      %v1434 = vadd.f32 %v1274, %v1398
      %v1435 = vadd.f32 %v1275, %v1400
      %v1436 = vadd.f32 %v1276, %v1402
      %v1437 = vadd.f32 %v1277, %v1404
      %v1438 = vadd.f32 %v1278, %v1406
      %v1439 = vld [vmem:[%s6] sm:$0xff]
      %v1440 = vld [vmem:[%s6 + $0x8] sm:$0xff]
      %v1441 = vld [vmem:[%s6 + $0x10] sm:$0xff]
      %v1442 = vld [vmem:[%s6 + $0x18] sm:$0xff]
      %v1443 = vld [vmem:[%s6 + $0x20] sm:$0xff]
      %v1444 = vld [vmem:[%s6 + $0x28] sm:$0xff]
      %v1445 = vld [vmem:[%s6 + $0x30] sm:$0xff]
      %v1446 = vld [vmem:[%s6 + $0x38] sm:$0xff]
      %v1447 = vld [vmem:[%s6 + $0x40] sm:$0xff]
      %v1448 = vld [vmem:[%s6 + $0x48] sm:$0xff]
      %v1449 = vld [vmem:[%s6 + $0x50] sm:$0xff]
      %v1450 = vld [vmem:[%s6 + $0x58] sm:$0xff]
      %v1451 = vld [vmem:[%s6 + $0x60] sm:$0xff]
      %v1452 = vld [vmem:[%s6 + $0x68] sm:$0xff]
      %v1453 = vld [vmem:[%s6 + $0x70] sm:$0xff]
      %v1454 = vld [vmem:[%s6 + $0x78] sm:$0xff]
      %1456 = vset.pattern.permute.xlu0 0
      %1457 = vperm.xlu0 %1456, %v1439
      %v1458 = vpop.permute.xlu0 %1457
      %1461 = vset.pattern.permute.xlu0 0
      %1462 = vperm.xlu0 %1461, %v1440
      %v1463 = vpop.permute.xlu0 %1462
      %1466 = vset.pattern.permute.xlu0 0
      %1467 = vperm.xlu0 %1466, %v1441
      %v1468 = vpop.permute.xlu0 %1467
      %1471 = vset.pattern.permute.xlu0 0
      %1472 = vperm.xlu0 %1471, %v1442
      %v1473 = vpop.permute.xlu0 %1472
      %1476 = vset.pattern.permute.xlu0 0
      %1477 = vperm.xlu0 %1476, %v1443
      %v1478 = vpop.permute.xlu0 %1477
      %1481 = vset.pattern.permute.xlu0 0
      %1482 = vperm.xlu0 %1481, %v1444
      %v1483 = vpop.permute.xlu0 %1482
      %1486 = vset.pattern.permute.xlu0 0
      %1487 = vperm.xlu0 %1486, %v1445
      %v1488 = vpop.permute.xlu0 %1487
      %1491 = vset.pattern.permute.xlu0 0
      %1492 = vperm.xlu0 %1491, %v1446
      %v1493 = vpop.permute.xlu0 %1492
      %1496 = vset.pattern.permute.xlu0 0
      %1497 = vperm.xlu0 %1496, %v1447
      %v1498 = vpop.permute.xlu0 %1497
      %1501 = vset.pattern.permute.xlu0 0
      %1502 = vperm.xlu0 %1501, %v1448
      %v1503 = vpop.permute.xlu0 %1502
      %1506 = vset.pattern.permute.xlu0 0
      %1507 = vperm.xlu0 %1506, %v1449
      %v1508 = vpop.permute.xlu0 %1507
      %1511 = vset.pattern.permute.xlu0 0
      %1512 = vperm.xlu0 %1511, %v1450
      %v1513 = vpop.permute.xlu0 %1512
      %1516 = vset.pattern.permute.xlu0 0
      %1517 = vperm.xlu0 %1516, %v1451
      %v1518 = vpop.permute.xlu0 %1517
      %1521 = vset.pattern.permute.xlu0 0
      %1522 = vperm.xlu0 %1521, %v1452
      %v1523 = vpop.permute.xlu0 %1522
      %1526 = vset.pattern.permute.xlu0 0
      %1527 = vperm.xlu0 %1526, %v1453
      %v1528 = vpop.permute.xlu0 %1527
      %1531 = vset.pattern.permute.xlu0 0
      %1532 = vperm.xlu0 %1531, %v1454
      %v1533 = vpop.permute.xlu0 %1532
      %v1535 = vadd.f32 %v1423, %v1458
      %v1536 = vadd.f32 %v1424, %v1463
      %v1537 = vadd.f32 %v1425, %v1468
      %v1538 = vadd.f32 %v1426, %v1473
      %v1539 = vadd.f32 %v1427, %v1478
      %v1540 = vadd.f32 %v1428, %v1483
      %v1541 = vadd.f32 %v1429, %v1488
      %v1542 = vadd.f32 %v1430, %v1493
      %v1543 = vadd.f32 %v1431, %v1498
      %v1544 = vadd.f32 %v1432, %v1503
      %v1545 = vadd.f32 %v1433, %v1508
      %v1546 = vadd.f32 %v1434, %v1513
      %v1547 = vadd.f32 %v1435, %v1518
      %v1548 = vadd.f32 %v1436, %v1523
      %v1549 = vadd.f32 %v1437, %v1528
      %v1550 = vadd.f32 %v1438, %v1533
      %vm1551 = vcmask 785408
      %1552 = vst.msk [vmem:[%s272] sm:$0xff] %vm1551, %v1535
      %1553 = vst.msk [vmem:[%s272 + $0x8] sm:$0xff] %vm1551, %v1536
      %1554 = vst.msk [vmem:[%s272 + $0x10] sm:$0xff] %vm1551, %v1537
      %1555 = vst.msk [vmem:[%s272 + $0x18] sm:$0xff] %vm1551, %v1538
      %1556 = vst.msk [vmem:[%s272 + $0x20] sm:$0xff] %vm1551, %v1539
      %1557 = vst.msk [vmem:[%s272 + $0x28] sm:$0xff] %vm1551, %v1540
      %1558 = vst.msk [vmem:[%s272 + $0x30] sm:$0xff] %vm1551, %v1541
      %1559 = vst.msk [vmem:[%s272 + $0x38] sm:$0xff] %vm1551, %v1542
      %1560 = vst.msk [vmem:[%s272 + $0x40] sm:$0xff] %vm1551, %v1543
      %1561 = vst.msk [vmem:[%s272 + $0x48] sm:$0xff] %vm1551, %v1544
      %1562 = vst.msk [vmem:[%s272 + $0x50] sm:$0xff] %vm1551, %v1545
      %1563 = vst.msk [vmem:[%s272 + $0x58] sm:$0xff] %vm1551, %v1546
      %1564 = vst.msk [vmem:[%s272 + $0x60] sm:$0xff] %vm1551, %v1547
      %1565 = vst.msk [vmem:[%s272 + $0x68] sm:$0xff] %vm1551, %v1548
      %1566 = vst.msk [vmem:[%s272 + $0x70] sm:$0xff] %vm1551, %v1549
      %1567 = vst.msk [vmem:[%s272 + $0x78] sm:$0xff] %vm1551, %v1550
      %p1568 = scmp.lt.s32.totalorder %s18, 1
      %s1569 = scalar_select %p1568, %s18, 1
      %s1570 = smul.addr %s1569, 16
      %s1571 = smul.addr %s1570, 8
      %s1572 = scalar_lea.vmem %s7, %s1571
      // Predicated region
      $region49: #{tpu_custom_call.1} parent=47 // pred_check
        %p1573 = pneg %p188
      $region50: #{tpu_custom_call.1} parent=47 // pred_check_branch
        %1575 = sbr.rel (%p1573) target = $region52
      $region51: #{tpu_custom_call.1} parent=47 // pred_region
        _
      $region52: #{tpu_custom_call.1} parent=47 // pred_fallthru
        _
    $region48: #{tpu_custom_call.1} parent=5 // pred_fallthru
      _
    %p1576 = scmp.le.s32.totalorder 2, %s13
    // Predicated region
    $region53: #{tpu_custom_call.1} parent=5 // pred_check
      %p1577 = pneg %p1576
    $region54: #{tpu_custom_call.1} parent=5 // pred_check_branch
      %1579 = sbr.rel (%p1577) target = $region56
    $region55: #{tpu_custom_call.1} parent=5 // pred_region
      %s1580 = ssub.s32 %s13, 2
      // Predicated region
      $region57: #{tpu_custom_call.1} parent=55 // pred_check
        %p1581 = pneg %p194
      $region58: #{tpu_custom_call.1} parent=55 // pred_check_branch
        %1583 = sbr.rel (%p1581) target = $region60
      $region59: #{tpu_custom_call.1} parent=55 // pred_region
        %p1584 = scmp.lt.s32.totalorder %s19, 1
        %s1585 = scalar_select %p1584, %s19, 1
        %s1586 = smul.addr %s1585, 16
        %s1587 = smul.addr %s1586, 8
        %s1588 = scalar_lea.vmem %s7, %s1587
      $region60: #{tpu_custom_call.1} parent=55 // pred_fallthru
        _
    $region56: #{tpu_custom_call.1} parent=5 // pred_fallthru
      _
  $region6: #{tpu_custom_call.1} parent=0 // loop_footer
    %s17 = sadd.s32 1, %s13
  $region7: #{tpu_custom_call.1} parent=0 // loop_footer_branch
    %12 = sbr.rel target = $region3
  $region8: #{tpu_custom_call.1} parent=0 // loop_exit
    _

</llo_original>
